<compile_context>
chip_gen: v7x
topology: tpu7x:2x2x1
jax: 0.10.0
libtpu: 0.0.40
codegen_flags: <defaults>
</compile_context>

<pallas_src>
import functools

import jax
import jax.numpy as jnp
from jax.experimental import pallas as pl
from jax.experimental.pallas import tpu as pltpu

_HIDDEN = 256
_NEG_BIG = -1e30        # bias for padded class columns (f32 only): never wins max, exp -> 0
_TILE_BUDGET = 40 << 20  # VMEM budget for tiles+weights; leaves headroom on v7x (64 MiB phys)


def _round_up(x, m):
    return (x + m - 1) // m * m


def _cdiv(a, b):
    return (a + b - 1) // b


def _make_kernel(num_classes):
    def kernel(x_ref, w1_ref, b1_ref, w2_ref, b2_ref, o_ref):
        """One batch tile: fc1 -> ReLU -> fc2 -> log_softmax.

        Matmuls run on the MXU with f32 accumulation; all elementwise math stays f32.
        The class axis is 128-padded for lane-dense reductions, but only the real
        `num_classes` columns are stored (unpadded output -> minimal HBM write bytes).
        """
        # fc1 on the MXU, f32 accumulation. Bias + ReLU stay f32 on the VPU.
        h = jnp.dot(x_ref[...], w1_ref[...], preferred_element_type=jnp.float32)
        h = jnp.maximum(h + b1_ref[...], 0.0)

        # fc2 on the MXU; cast h to the matmul dtype (bf16 when requested), accumulate f32.
        logits = jnp.dot(h.astype(w2_ref.dtype), w2_ref[...],
                         preferred_element_type=jnp.float32) + b2_ref[...]

        # Numerically stable log_softmax over the (padded, lane-dense) class axis.
        # Padded classes carry a -1e30 f32 bias: never win the max, contribute 0 to exp-sum.
        m = jnp.max(logits, axis=-1, keepdims=True)
        shifted = logits - m
        lse = jnp.log(jnp.sum(jnp.exp(shifted), axis=-1, keepdims=True))
        logprobs = shifted - lse

        # Store only the real classes (masked store, but ~12x fewer HBM write bytes for C=10).
        o_ref[...] = logprobs[:, :num_classes].astype(o_ref.dtype)

    return kernel


def classification_forward(x, w1, b1, w2, b2, *, block_b=1024, matmul_dtype=None,
                           out_dtype=jnp.float32, x_buffer_count=2):
    """
    x:  (B, emb)   activations
    w1: (emb, 256) fc1 weight (pre-transposed), b1: (1, 256)
    w2: (256, C)   fc2 weight (pre-transposed), b2: (1, C)
    Returns log_softmax(fc2(relu(fc1(x))), axis=1) with shape (B, C), dtype `out_dtype`.

    matmul_dtype: e.g. jnp.bfloat16 to run the MXU in bf16 with f32 accumulation. This is
        beneficial on ALL generations (v5e/v6e/v7x MXUs are bf16-native; elementwise stays f32).
    out_dtype:    jnp.bfloat16 halves the dominant HBM write traffic for the output.
    block_b:      batch tile size (rows); sweepable. Rounded to the packed sublane multiple
        and capped by a VMEM budget that fits v7x (64 MiB physical).
    x_buffer_count: pipeline depth for the x tile (set 3 to hide DMA issue latency when E is
        tiny and the grid is long; default 2 = standard double buffering).
    """
    B, E = x.shape
    H = w1.shape[1]
    C = w2.shape[1]

    in_dtype = jnp.dtype(matmul_dtype) if matmul_dtype is not None else jnp.dtype(x.dtype)
    out_dtype = jnp.dtype(out_dtype)
    # Packed sublane multiple: 8 rows for 32-bit, 16 for bf16, 32 for 8-bit inputs.
    sub = 8 * max(1, 4 // in_dtype.itemsize)

    # --- Lane-dense class axis for the matmul / reductions: pad C to a multiple of 128.
    #     Padded weight columns are zero and padded biases are -1e30 (kept strictly f32),
    #     so the log_softmax of the real columns is unchanged. Output stays UNPADDED.
    c_pad = _round_up(max(C, 128), 128)
    if c_pad != C:
        w2 = jnp.pad(w2, ((0, 0), (0, c_pad - C)))
        b2 = jnp.pad(b2, ((0, 0), (0, c_pad - C)), constant_values=_NEG_BIG)

    # --- Batch tile: as large as block_b allows (fewer grid steps => less per-step overhead).
    tb = _round_up(min(block_b, _round_up(B, sub)), sub)
    # Guarantee >= 2 grid steps when possible so dimension_semantics=("parallel",) can shard
    # the batch across v7x's two TensorCores instead of leaving one idle.
    if _cdiv(B, tb) < 2 and B > sub:
        tb = _round_up(_cdiv(B, 2), sub)

    # --- VMEM budget: double-buffered x/out tiles + resident weights/biases (counted x2 to be
    #     conservative about Pallas buffering). Cap tb so this fits v7x's 64 MiB physical VMEM.
    def _tile_bytes(t):
        return (2 * t * E * in_dtype.itemsize            # x tile, double-buffered
                + 2 * t * C * out_dtype.itemsize         # out tile (unpadded), double-buffered
                + 2 * (E * H + H * c_pad) * in_dtype.itemsize  # weights
                + 2 * (H + c_pad) * 4)                   # biases (f32)

    while _tile_bytes(tb) > _TILE_BUDGET and tb > sub:
        tb = max(sub, _round_up(tb // 2, sub))

    b_pad = _round_up(B, tb)
    if b_pad != B:
        x = jnp.pad(x, ((0, b_pad - B), (0, 0)))
    nb = b_pad // tb

    # --- Matmul-input dtype (bf16 halves HBM read bytes for x and weights on every gen).
    #     Biases and all elementwise math stay f32.
    if matmul_dtype is not None:
        x = x.astype(matmul_dtype)
        w1 = w1.astype(matmul_dtype)
        w2 = w2.astype(matmul_dtype)
    b1 = b1.astype(jnp.float32)
    b2 = b2.astype(jnp.float32)

    # Explicit VMEM limit: don't rely on the per-generation default scoped limit
    # (16 MiB on v5e, 32 MiB on v6e/v7x); never request more than v7x can physically hold.
    footprint = _tile_bytes(tb)
    vmem_limit = int(max(32 << 20, min(footprint + footprint // 4 + (2 << 20), 60 << 20)))

    vmem = pltpu.MemorySpace.VMEM
    x_spec_kwargs = {}
    if x_buffer_count != 2:
        x_spec_kwargs["pipeline_mode"] = pl.Buffered(x_buffer_count)

    out = pl.pallas_call(
        _make_kernel(C),
        out_shape=jax.ShapeDtypeStruct((b_pad, C), out_dtype),
        grid=(nb,),
        in_specs=[
            pl.BlockSpec((tb, E), lambda i: (i, 0), memory_space=vmem,
                         **x_spec_kwargs),                                  # x: batch-tiled
            pl.BlockSpec((E, H), lambda i: (0, 0), memory_space=vmem),      # w1: VMEM-resident
            pl.BlockSpec((1, H), lambda i: (0, 0), memory_space=vmem),      # b1: VMEM-resident
            pl.BlockSpec((H, c_pad), lambda i: (0, 0), memory_space=vmem),  # w2: VMEM-resident
            pl.BlockSpec((1, c_pad), lambda i: (0, 0), memory_space=vmem),  # b2: VMEM-resident
        ],
        # Unpadded output block: last dim == full array dim, so no 128-padding required; this
        # removes the wrapper-side padded slice copy that used to double output HBM traffic.
        out_specs=pl.BlockSpec((tb, C), lambda i: (i, 0), memory_space=vmem),
        compiler_params=pltpu.CompilerParams(
            dimension_semantics=("parallel",),   # batch axis shards across TCs on v7x
            vmem_limit_bytes=vmem_limit,
        ),
    )(x, w1, b1, w2, b2)

    # Only the (cheap) row slice remains when the batch needed padding.
    return out if b_pad == B else out[:B]


def init_params(key, emb_size, num_classes, hidden=_HIDDEN):
    """Deterministic init mimicking torch.nn.Linear's uniform(-1/sqrt(in), 1/sqrt(in))."""
    k1, k2, k3, k4 = jax.random.split(key, 4)
    lim1 = 1.0 / jnp.sqrt(emb_size)
    lim2 = 1.0 / jnp.sqrt(hidden)
    # Stored already transposed: (in_features, out_features)
    w1 = jax.random.uniform(k1, (emb_size, hidden), jnp.float32, -lim1, lim1)
    b1 = jax.random.uniform(k2, (1, hidden), jnp.float32, -lim1, lim1)
    w2 = jax.random.uniform(k3, (hidden, num_classes), jnp.float32, -lim2, lim2)
    b2 = jax.random.uniform(k4, (1, num_classes), jnp.float32, -lim2, lim2)
    return w1, b1, w2, b2


def reference_forward(x, w1, b1, w2, b2):
    h = jnp.maximum(x @ w1 + b1, 0.0)
    logits = h @ w2 + b2
    return jax.nn.log_softmax(logits, axis=1)


if __name__ == "__main__":
    key = jax.random.PRNGKey(0)
    batch, emb_size, num_classes = 8, 32, 10

    kx, kp = jax.random.split(key)
    x = jax.random.normal(kx, (batch, emb_size), dtype=jnp.float32)
    w1, b1, w2, b2 = init_params(kp, emb_size, num_classes)
    ref = reference_forward(x, w1, b1, w2, b2)

    # f32 matmul path: bit-comparable to the JAX reference.
    out = classification_forward(x, w1, b1, w2, b2)
    out = jax.block_until_ready(out)
    assert out.shape == (batch, num_classes)
    assert jnp.allclose(out, ref, atol=1e-5, rtol=1e-5), "f32 kernel mismatch vs JAX reference"

    # bf16 matmul path (f32 accumulation / elementwise) — valid on v5e/v6e/v7x alike.
    out_bf16 = classification_forward(x, w1, b1, w2, b2, matmul_dtype=jnp.bfloat16)
    out_bf16 = jax.block_until_ready(out_bf16)
    assert out_bf16.shape == (batch, num_classes)
    assert jnp.allclose(out_bf16, ref, atol=5e-2, rtol=5e-2), "bf16 matmul outside tolerance"

    # bf16 output path (halves the dominant HBM write traffic).
    out_o16 = classification_forward(x, w1, b1, w2, b2, out_dtype=jnp.bfloat16)
    out_o16 = jax.block_until_ready(out_o16)
    assert out_o16.dtype == jnp.bfloat16 and out_o16.shape == (batch, num_classes)
    assert jnp.allclose(out_o16.astype(jnp.float32), ref, atol=2e-2, rtol=2e-2), \
        "bf16-output kernel outside tolerance"

    # Multi-tile grid plus a ragged batch that needs row padding.
    xb = jax.random.normal(kx, (40, emb_size), dtype=jnp.float32)
    ref_b = reference_forward(xb, w1, b1, w2, b2)
    out_b = classification_forward(xb, w1, b1, w2, b2, block_b=16)
    out_b = jax.block_until_ready(out_b)
    assert out_b.shape == (40, num_classes)
    assert jnp.allclose(out_b, ref_b, atol=1e-5, rtol=1e-5), "tiled kernel mismatch vs reference"

    # Default block_b with B=40 exercises the forced 2-way split (>=2 grid steps for megacore).
    out_s = classification_forward(xb, w1, b1, w2, b2)
    out_s = jax.block_until_ready(out_s)
    assert jnp.allclose(out_s, ref_b, atol=1e-5, rtol=1e-5), "split-tile kernel mismatch"

    print("KERNEL_OK")
</pallas_src>

<mosaic_0001>
module attributes {stable_mosaic.version = 11 : i64} {
  func.func @kernel(%arg0: i32, %arg1: memref<8x32xf32, #tpu.memory_space<vmem>>, %arg2: memref<32x256xf32, #tpu.memory_space<vmem>>, %arg3: memref<1x256xf32, #tpu.memory_space<vmem>>, %arg4: memref<256x128xf32, #tpu.memory_space<vmem>>, %arg5: memref<1x128xf32, #tpu.memory_space<vmem>>, %arg6: memref<8x10xf32, #tpu.memory_space<vmem>>) attributes {dimension_semantics = [#tpu.dimension_semantics<parallel>], iteration_bounds = array<i64: 1>, scalar_prefetch = 0 : i64, scratch_operands = 0 : i64, tpu.core_type = #tpu.core_type<tc>, window_params = [{transform_indices = @transform_0, window_bounds = array<i64: 8, 32>}, {pipeline_mode = #tpu.pipeline_mode<synchronous>, transform_indices = @transform_1, window_bounds = array<i64: 32, 256>}, {pipeline_mode = #tpu.pipeline_mode<synchronous>, transform_indices = @transform_2, window_bounds = array<i64: 1, 256>}, {pipeline_mode = #tpu.pipeline_mode<synchronous>, transform_indices = @transform_3, window_bounds = array<i64: 256, 128>}, {pipeline_mode = #tpu.pipeline_mode<synchronous>, transform_indices = @transform_4, window_bounds = array<i64: 1, 128>}, {transform_indices = @transform_5, window_bounds = array<i64: 8, 10>}]} {
    %c0 = arith.constant 0 : index
    %c0_0 = arith.constant 0 : index
    %0 = vector.load %arg1[%c0, %c0_0] : memref<8x32xf32, #tpu.memory_space<vmem>>, vector<8x32xf32>
    %c0_1 = arith.constant 0 : index
    %c0_2 = arith.constant 0 : index
    %1 = vector.load %arg2[%c0_1, %c0_2] : memref<32x256xf32, #tpu.memory_space<vmem>>, vector<32x256xf32>
    %cst = arith.constant dense<0.000000e+00> : vector<8x256xf32>
    %2 = tpu.matmul %0, %1, %cst {dimension_numbers = #tpu.dot_dimension_numbers<[1], [0], [0], [1], [0, 0, 1, 1], [], []>} : vector<8x32xf32>, vector<32x256xf32>, vector<8x256xf32> -> vector<8x256xf32>
    %c0_3 = arith.constant 0 : index
    %c0_4 = arith.constant 0 : index
    %3 = vector.load %arg3[%c0_3, %c0_4] : memref<1x256xf32, #tpu.memory_space<vmem>>, vector<1x256xf32>
    %4 = vector.broadcast %3 : vector<1x256xf32> to vector<8x256xf32>
    %5 = arith.addf %2, %4 : vector<8x256xf32>
    %cst_5 = arith.constant 0.000000e+00 : f32
    %6 = vector.broadcast %cst_5 : f32 to vector<8x256xf32>
    %7 = arith.maximumf %5, %6 : vector<8x256xf32>
    %c0_6 = arith.constant 0 : index
    %c0_7 = arith.constant 0 : index
    %8 = vector.load %arg4[%c0_6, %c0_7] : memref<256x128xf32, #tpu.memory_space<vmem>>, vector<256x128xf32>
    %cst_8 = arith.constant dense<0.000000e+00> : vector<8x128xf32>
    %9 = tpu.matmul %7, %8, %cst_8 {dimension_numbers = #tpu.dot_dimension_numbers<[1], [0], [0], [1], [0, 0, 1, 1], [], []>} : vector<8x256xf32>, vector<256x128xf32>, vector<8x128xf32> -> vector<8x128xf32>
    %c0_9 = arith.constant 0 : index
    %c0_10 = arith.constant 0 : index
    %10 = vector.load %arg5[%c0_9, %c0_10] : memref<1x128xf32, #tpu.memory_space<vmem>>, vector<1x128xf32>
    %11 = vector.broadcast %10 : vector<1x128xf32> to vector<8x128xf32>
    %12 = arith.addf %9, %11 : vector<8x128xf32>
    %cst_11 = arith.constant dense<0xFF800000> : vector<8xf32>
    %13 = vector.multi_reduction <maximumf>, %12, %cst_11 [1] : vector<8x128xf32> to vector<8xf32>
    %14 = vector.shape_cast %13 : vector<8xf32> to vector<8x1xf32>
    %15 = vector.broadcast %14 : vector<8x1xf32> to vector<8x128xf32>
    %16 = arith.subf %12, %15 : vector<8x128xf32>
    %17 = math.exp %16 : vector<8x128xf32>
    %cst_12 = arith.constant dense<0.000000e+00> : vector<8xf32>
    %18 = vector.multi_reduction <add>, %17, %cst_12 [1] : vector<8x128xf32> to vector<8xf32>
    %19 = vector.shape_cast %18 : vector<8xf32> to vector<8x1xf32>
    %20 = math.log %19 : vector<8x1xf32>
    %21 = vector.broadcast %20 : vector<8x1xf32> to vector<8x128xf32>
    %22 = arith.subf %16, %21 : vector<8x128xf32>
    %23 = vector.extract_strided_slice %22 {offsets = [0, 0], sizes = [8, 10], strides = [1, 1]} : vector<8x128xf32> to vector<8x10xf32>
    %c0_13 = arith.constant 0 : index
    %c0_14 = arith.constant 0 : index
    %24 = vector.load %arg6[%c0_13, %c0_14] : memref<8x10xf32, #tpu.memory_space<vmem>>, vector<8x10xf32>
    tpu.vector_store %arg6[%c0_13, %c0_14], %23 {strides = array<i32>} : memref<8x10xf32, #tpu.memory_space<vmem>>, vector<8x10xf32>,
    return
  }
  func.func @transform_0(%arg0: i32) -> (i32, i32) {
    %c0_i32 = arith.constant 0 : i32
    %c0_i32_0 = arith.constant 0 : i32
    return %arg0, %c0_i32 : i32, i32
  }
  func.func @transform_1(%arg0: i32) -> (i32, i32) {
    %c0_i32 = arith.constant 0 : i32
    %c0_i32_0 = arith.constant 0 : i32
    %c0_i32_1 = arith.constant 0 : i32
    return %c0_i32, %c0_i32_0 : i32, i32
  }
  func.func @transform_2(%arg0: i32) -> (i32, i32) {
    %c0_i32 = arith.constant 0 : i32
    %c0_i32_0 = arith.constant 0 : i32
    %c0_i32_1 = arith.constant 0 : i32
    return %c0_i32, %c0_i32_0 : i32, i32
  }
  func.func @transform_3(%arg0: i32) -> (i32, i32) {
    %c0_i32 = arith.constant 0 : i32
    %c0_i32_0 = arith.constant 0 : i32
    %c0_i32_1 = arith.constant 0 : i32
    return %c0_i32, %c0_i32_0 : i32, i32
  }
  func.func @transform_4(%arg0: i32) -> (i32, i32) {
    %c0_i32 = arith.constant 0 : i32
    %c0_i32_0 = arith.constant 0 : i32
    %c0_i32_1 = arith.constant 0 : i32
    return %c0_i32, %c0_i32_0 : i32, i32
  }
  func.func @transform_5(%arg0: i32) -> (i32, i32) {
    %c0_i32 = arith.constant 0 : i32
    %c0_i32_0 = arith.constant 0 : i32
    return %arg0, %c0_i32 : i32, i32
  }
}

</mosaic_0001>

<llo_original>
// kernel: tpu_custom_call.1
$region0: #{tpu_custom_call.1}
  #allocation0 [shape = 'u32[]', space=smem, size = 0x4, offset = 0x4, fixed_abs, tag = 'smem constant byte address 0x4 - core index']
  #allocation1 [shape = 'u32[144,128]{1,0:T(1,128)}', space=vmem, size = 0x12000, scoped, tag = 'internal scratch']
  %s0 = inlined_call_operand.hbm [shape: f32[8,32], index: 0, kind: input, shape index: {}]
  %s1 = inlined_call_operand.hbm [shape: f32[32,256], index: 1, kind: input, shape index: {}]
  %s2 = inlined_call_operand.vmem [shape: f32[1,256], index: 2, kind: input, shape index: {}]
  %s3 = inlined_call_operand.hbm [shape: f32[256,128], index: 3, kind: input, shape index: {}]
  %s4 = inlined_call_operand.vmem [shape: f32[1,128], index: 4, kind: input, shape index: {}]
  %s5 = inlined_call_operand.hbm [shape: f32[8,10], index: 5, kind: output, shape index: {}]
  %s6 = sld [smem:[#allocation0]]
  $region42: #{tpu_custom_call.1} parent=0
    _
  %s8 = ssub.s32 1, %s6
  %s9 = scalar_select 0, %s8, %s6
  $region1: #{tpu_custom_call.1} parent=0
    #allocation2 [shape = 'u8[4096]{0}', space=vmem, size = 0x1000, scoped, tag = 'input window, operand 0, single buffered']
    #allocation3 [shape = 's32[1]{0}', space=sflag, size = 0x4, scoped, tag = 'scoped memory for tpu_custom_call.1']
    #allocation4 [shape = 's32[1]{0}', space=sflag, size = 0x4, scoped, tag = 'scoped memory for tpu_custom_call.1']
    #allocation5 [shape = 'u8[32768]{0}', space=vmem, size = 0x8000, scoped, tag = 'input window, operand 1, single buffered']
    #allocation6 [shape = 's32[1]{0}', space=sflag, size = 0x4, scoped, tag = 'scoped memory for tpu_custom_call.1']
    #allocation7 [shape = 'u8[131072]{0}', space=vmem, size = 0x20000, scoped, tag = 'input window, operand 3, single buffered']
    #allocation8 [shape = 'u8[4096]{0}', space=vmem, size = 0x1000, scoped, tag = 'output window, operand 0, single buffered']
    %10 = vsyncpa [#allocation3], 0
    %11 = vsyncpa [#allocation6], 0
    %12 = vsyncpa [#allocation4], 0
    // Predicated region
    $region2: #{tpu_custom_call.1} parent=1 // pred_check
      _
    $region3: #{tpu_custom_call.1} parent=1 // pred_check_branch
      %14 = sbr.rel (0) target = $region5
    $region4: #{tpu_custom_call.1} parent=1 // pred_region
      %s16 = ssub.s32 128, 128
      %17 = vsyncadd [#allocation3], %s16
      %s19 = sshll.u32 [#allocation2], 4
      %s20 = int_to_ptr.vmem [resolvable:$true] %s19
      %22 = dma.hbm_to_vmem [thread:$0]  %s0, 128, %s20, [#allocation3]
    $region5: #{tpu_custom_call.1} parent=1 // pred_fallthru
      _
    // Predicated region
    $region6: #{tpu_custom_call.1} parent=1 // pred_check
      _
    $region7: #{tpu_custom_call.1} parent=1 // pred_check_branch
      %24 = sbr.rel (0) target = $region9
    $region8: #{tpu_custom_call.1} parent=1 // pred_region
      %s26 = ssub.s32 1024, 1024
      %27 = vsyncadd [#allocation6], %s26
      %s28 = sshll.u32 [#allocation5], 4
      %s29 = int_to_ptr.vmem [resolvable:$true] %s28
      %34 = dma.hbm_to_vmem [thread:$0]  %s1, 1024, %s29, [#allocation6], 256, 256, 16
    $region9: #{tpu_custom_call.1} parent=1 // pred_fallthru
      _
    // Predicated region
    $region10: #{tpu_custom_call.1} parent=1 // pred_check
      _
    $region11: #{tpu_custom_call.1} parent=1 // pred_check_branch
      %36 = sbr.rel (0) target = $region13
    $region12: #{tpu_custom_call.1} parent=1 // pred_region
      _
    $region13: #{tpu_custom_call.1} parent=1 // pred_fallthru
      _
    // Predicated region
    $region14: #{tpu_custom_call.1} parent=1 // pred_check
      _
    $region15: #{tpu_custom_call.1} parent=1 // pred_check_branch
      %38 = sbr.rel (0) target = $region17
    $region16: #{tpu_custom_call.1} parent=1 // pred_region
      %s40 = ssub.s32 4096, 4096
      %41 = vsyncadd [#allocation6], %s40
      %s42 = sshll.u32 [#allocation7], 4
      %s43 = int_to_ptr.vmem [resolvable:$true] %s42
      %48 = dma.hbm_to_vmem [thread:$0]  %s3, 4096, %s43, [#allocation6], 128, 128, 8
    $region17: #{tpu_custom_call.1} parent=1 // pred_fallthru
      _
    // Predicated region
    $region18: #{tpu_custom_call.1} parent=1 // pred_check
      _
    $region19: #{tpu_custom_call.1} parent=1 // pred_check_branch
      %50 = sbr.rel (0) target = $region21
    $region20: #{tpu_custom_call.1} parent=1 // pred_region
      _
    $region21: #{tpu_custom_call.1} parent=1 // pred_fallthru
      _
    // Predicated region
    $region22: #{tpu_custom_call.1} parent=1 // pred_check
      _
    $region23: #{tpu_custom_call.1} parent=1 // pred_check_branch
      %52 = sbr.rel (0) target = $region25
    $region24: #{tpu_custom_call.1} parent=1 // pred_region
      %53 = dma.done [#allocation3], 128
    $region25: #{tpu_custom_call.1} parent=1 // pred_fallthru
      _
    // Predicated region
    $region26: #{tpu_custom_call.1} parent=1 // pred_check
      _
    $region27: #{tpu_custom_call.1} parent=1 // pred_check_branch
      %55 = sbr.rel (0) target = $region29
    $region28: #{tpu_custom_call.1} parent=1 // pred_region
      %56 = dma.done [#allocation6], 1024
    $region29: #{tpu_custom_call.1} parent=1 // pred_fallthru
      _
    // Predicated region
    $region30: #{tpu_custom_call.1} parent=1 // pred_check
      _
    $region31: #{tpu_custom_call.1} parent=1 // pred_check_branch
      %58 = sbr.rel (0) target = $region33
    $region32: #{tpu_custom_call.1} parent=1 // pred_region
      %59 = dma.done [#allocation6], 4096
    $region33: #{tpu_custom_call.1} parent=1 // pred_fallthru
      _
    %v60 = vld [vmem:[#allocation2] sm:$0xff]
    %v61 = vld [vmem:[#allocation5] sm:$0xff]
    %v62 = vld [vmem:[#allocation5 + $0x8] sm:$0xff]
    %v63 = vld [vmem:[#allocation5 + $0x10] sm:$0xff]
    %v64 = vld [vmem:[#allocation5 + $0x18] sm:$0xff]
    %v65 = vld [vmem:[#allocation5 + $0x20] sm:$0xff]
    %v66 = vld [vmem:[#allocation5 + $0x28] sm:$0xff]
    %v67 = vld [vmem:[#allocation5 + $0x30] sm:$0xff]
    %v68 = vld [vmem:[#allocation5 + $0x38] sm:$0xff]
    %v69 = vld [vmem:[%s2] sm:$0x3]
    %v71 = vlaneseq
    %v72 = vshrl.u32 %v71, 7
    %v73 = vsub.s32 0, %v72
    %v74 = vrot.slane %v69, %v73
    %v75 = vlaneseq
    %v76 = vshrl.u32 %v75, 7
    %v77 = vsub.s32 1, %v76
    %v78 = vrot.slane %v69, %v77
    %vm81 = vcmask 261120
    %v83 = vsel %vm81, %v60, 0
    %85 = vmatprep.subr.mxu0 %v62
    %86 = vmatpush1.msra.mxu0 %v61
    %87 = vmatprep.subr.mxu0 %v64
    %88 = vmatpush1.msra.mxu0 %v63
    %89 = vmatprep.subr.mxu0 %v66
    %90 = vmatpush1.msra.mxu0 %v65
    %91 = vmatprep.subr.mxu0 %v68
    %92 = vmatpush1.msra.mxu0 %v67
    %93 = vmatprep.subr.mxu0 0.0
    %94 = vmatpush1.msra.mxu0 0.0
    %95 = vmatprep.subr.mxu0 0.0
    %96 = vmatpush1.msra.mxu0 0.0
    %97 = vmatprep.subr.mxu0 0.0
    %98 = vmatpush1.msra.mxu0 0.0
    %99 = vmatprep.subr.mxu0 0.0
    %100 = vmatpush1.msra.mxu0 0.0
    %101 = vmatprep.subr.mxu0 0.0
    %102 = vmatpush1.msra.mxu0 0.0
    %103 = vmatprep.subr.mxu0 0.0
    %104 = vmatpush1.msra.mxu0 0.0
    %105 = vmatprep.subr.mxu0 0.0
    %106 = vmatpush1.msra.mxu0 0.0
    %107 = vmatprep.subr.mxu0 0.0
    %108 = vmatpush1.msra.mxu0 0.0
    %109 = vmatprep.subr.mxu0 0.0
    %110 = vmatpush1.msra.mxu0 0.0
    %111 = vmatprep.subr.mxu0 0.0
    %112 = vmatpush1.msra.mxu0 0.0
    %113 = vmatprep.subr.mxu0 0.0
    %114 = vmatpush1.msra.mxu0 0.0
    %115 = vmatprep.subr.mxu0 0.0
    %116 = vmatpush1.msra.mxu0 0.0
    %117 = vmatprep.subr.mxu0 0.0
    %118 = vmatpush1.msra.mxu0 0.0
    %119 = vmatprep.subr.mxu0 0.0
    %120 = vmatpush1.msra.mxu0 0.0
    %121 = vmatprep.subr.mxu0 0.0
    %122 = vmatpush1.msra.mxu0 0.0
    %123 = vmatprep.subr.mxu0 0.0
    %124 = vmatpush1.msra.mxu0 0.0
    %125 = vmatprep.subr.mxu0 0.0
    %126 = vmatpush1.msra.mxu0 0.0
    %127 = vmatprep.subr.mxu0 0.0
    %128 = vmatpush1.msra.mxu0 0.0
    %129 = vmatprep.subr.mxu0 0.0
    %130 = vmatpush1.msra.mxu0 0.0
    %131 = vmatprep.subr.mxu0 0.0
    %132 = vmatpush1.msra.mxu0 0.0
    %133 = vmatprep.subr.mxu0 0.0
    %134 = vmatpush1.msra.mxu0 0.0
    %135 = vmatprep.subr.mxu0 0.0
    %136 = vmatpush1.msra.mxu0 0.0
    %137 = vmatprep.subr.mxu0 0.0
    %138 = vmatpush1.msra.mxu0 0.0
    %139 = vmatprep.subr.mxu0 0.0
    %140 = vmatpush1.msra.mxu0 0.0
    %141 = vmatprep.subr.mxu0 0.0
    %142 = vmatpush1.msra.mxu0 0.0
    %143 = vmatprep.subr.mxu0 0.0
    %144 = vmatpush1.msra.mxu0 0.0
    %145 = vmatprep.subr.mxu0 0.0
    %146 = vmatpush1.msra.mxu0 0.0
    %147 = vmatprep.subr.mxu0 0.0
    %148 = vmatpush1.msra.mxu0 0.0
    %149 = vmatprep.mubr.f32.mxu0 0.0
    %150 = vmatmul.mubr.f32.gmra.mrb[0].mxu0 %v83
    %v151 = vpop.f32.mrb[0].mxu0
    %v152 = vadd.f32 %v74, %v151
    %v153 = vpop.f32.mrb[0].mxu0
    %v154 = vadd.f32 %v78, %v153
    %155 = vdwg.mxu0
    %v156 = vmax.f32 %v152, 0.0
    %v157 = vmax.f32 %v154, 0.0
    %v158 = vld [vmem:[#allocation7] sm:$0xff]
    %v159 = vld [vmem:[#allocation7 + $0x8] sm:$0xff]
    %v160 = vld [vmem:[#allocation7 + $0x10] sm:$0xff]
    %v161 = vld [vmem:[#allocation7 + $0x18] sm:$0xff]
    %v162 = vld [vmem:[#allocation7 + $0x20] sm:$0xff]
    %v163 = vld [vmem:[#allocation7 + $0x28] sm:$0xff]
    %v164 = vld [vmem:[#allocation7 + $0x30] sm:$0xff]
    %v165 = vld [vmem:[#allocation7 + $0x38] sm:$0xff]
    %v166 = vld [vmem:[#allocation7 + $0x40] sm:$0xff]
    %v167 = vld [vmem:[#allocation7 + $0x48] sm:$0xff]
    %v168 = vld [vmem:[#allocation7 + $0x50] sm:$0xff]
    %v169 = vld [vmem:[#allocation7 + $0x58] sm:$0xff]
    %v170 = vld [vmem:[#allocation7 + $0x60] sm:$0xff]
    %v171 = vld [vmem:[#allocation7 + $0x68] sm:$0xff]
    %v172 = vld [vmem:[#allocation7 + $0x70] sm:$0xff]
    %v173 = vld [vmem:[#allocation7 + $0x78] sm:$0xff]
    %v174 = vld [vmem:[#allocation7 + $0x80] sm:$0xff]
    %v175 = vld [vmem:[#allocation7 + $0x88] sm:$0xff]
    %v176 = vld [vmem:[#allocation7 + $0x90] sm:$0xff]
    %v177 = vld [vmem:[#allocation7 + $0x98] sm:$0xff]
    %v178 = vld [vmem:[#allocation7 + $0xa0] sm:$0xff]
    %v179 = vld [vmem:[#allocation7 + $0xa8] sm:$0xff]
    %v180 = vld [vmem:[#allocation7 + $0xb0] sm:$0xff]
    %v181 = vld [vmem:[#allocation7 + $0xb8] sm:$0xff]
    %v182 = vld [vmem:[#allocation7 + $0xc0] sm:$0xff]
    %v183 = vld [vmem:[#allocation7 + $0xc8] sm:$0xff]
    %v184 = vld [vmem:[#allocation7 + $0xd0] sm:$0xff]
    %v185 = vld [vmem:[#allocation7 + $0xd8] sm:$0xff]
    %v186 = vld [vmem:[#allocation7 + $0xe0] sm:$0xff]
    %v187 = vld [vmem:[#allocation7 + $0xe8] sm:$0xff]
    %v188 = vld [vmem:[#allocation7 + $0xf0] sm:$0xff]
    %v189 = vld [vmem:[#allocation7 + $0xf8] sm:$0xff]
    %v190 = vld [vmem:[%s4] sm:$0x1]
    %v192 = vlaneseq
    %v193 = vshrl.u32 %v192, 7
    %v194 = vsub.s32 0, %v193
    %v195 = vrot.slane %v190, %v194
    %197 = vmatprep.subr.mxu0 0.0
    %198 = vmatpush1.msra.mxu0 %v158
    %199 = vmatprep.subr.mxu0 0.0
    %200 = vmatpush1.msra.mxu0 %v159
    %201 = vmatprep.subr.mxu0 0.0
    %202 = vmatpush1.msra.mxu0 %v160
    %203 = vmatprep.subr.mxu0 0.0
    %204 = vmatpush1.msra.mxu0 %v161
    %205 = vmatprep.subr.mxu0 0.0
    %206 = vmatpush1.msra.mxu0 %v162
    %207 = vmatprep.subr.mxu0 0.0
    %208 = vmatpush1.msra.mxu0 %v163
    %209 = vmatprep.subr.mxu0 0.0
    %210 = vmatpush1.msra.mxu0 %v164
    %211 = vmatprep.subr.mxu0 0.0
    %212 = vmatpush1.msra.mxu0 %v165
    %213 = vmatprep.subr.mxu0 0.0
    %214 = vmatpush1.msra.mxu0 %v166
    %215 = vmatprep.subr.mxu0 0.0
    %216 = vmatpush1.msra.mxu0 %v167
    %217 = vmatprep.subr.mxu0 0.0
    %218 = vmatpush1.msra.mxu0 %v168
    %219 = vmatprep.subr.mxu0 0.0
    %220 = vmatpush1.msra.mxu0 %v169
    %221 = vmatprep.subr.mxu0 0.0
    %222 = vmatpush1.msra.mxu0 %v170
    %223 = vmatprep.subr.mxu0 0.0
    %224 = vmatpush1.msra.mxu0 %v171
    %225 = vmatprep.subr.mxu0 0.0
    %226 = vmatpush1.msra.mxu0 %v172
    %227 = vmatprep.subr.mxu0 0.0
    %228 = vmatpush1.msra.mxu0 %v173
    %229 = vmatprep.subr.mxu0 0.0
    %230 = vmatpush1.msra.mxu0 %v174
    %231 = vmatprep.subr.mxu0 0.0
    %232 = vmatpush1.msra.mxu0 %v175
    %233 = vmatprep.subr.mxu0 0.0
    %234 = vmatpush1.msra.mxu0 %v176
    %235 = vmatprep.subr.mxu0 0.0
    %236 = vmatpush1.msra.mxu0 %v177
    %237 = vmatprep.subr.mxu0 0.0
    %238 = vmatpush1.msra.mxu0 %v178
    %239 = vmatprep.subr.mxu0 0.0
    %240 = vmatpush1.msra.mxu0 %v179
    %241 = vmatprep.subr.mxu0 0.0
    %242 = vmatpush1.msra.mxu0 %v180
    %243 = vmatprep.subr.mxu0 0.0
    %244 = vmatpush1.msra.mxu0 %v181
    %245 = vmatprep.subr.mxu0 0.0
    %246 = vmatpush1.msra.mxu0 %v182
    %247 = vmatprep.subr.mxu0 0.0
    %248 = vmatpush1.msra.mxu0 %v183
    %249 = vmatprep.subr.mxu0 0.0
    %250 = vmatpush1.msra.mxu0 %v184
    %251 = vmatprep.subr.mxu0 0.0
    %252 = vmatpush1.msra.mxu0 %v185
    %253 = vmatprep.subr.mxu0 0.0
    %254 = vmatpush1.msra.mxu0 %v186
    %255 = vmatprep.subr.mxu0 0.0
    %256 = vmatpush1.msra.mxu0 %v187
    %257 = vmatprep.subr.mxu0 0.0
    %258 = vmatpush1.msra.mxu0 %v188
    %259 = vmatprep.subr.mxu0 0.0
    %260 = vmatpush1.msra.mxu0 %v189
    %261 = vmatprep.mubr.f32.mxu0 %v157
    %262 = vmatmul.mubr.f32.gmra.mrb[0].mxu0 %v156
    %v263 = vpop.f32.mrb[0].mxu0
    %v264 = vadd.f32 %v195, %v263
    %v265 = vpop.f32.mrb[0].mxu0
    %266 = vdwg.mxu0
    %267 = vmax.xlane.f32.xlu0 %v264
    %v268 = vpop.xlane.xlu0 %267
    %v269 = vsub.f32 %v264, %v268
    %v270 = vmul.f32 %v269, 1.442695
    %v271 = vpow.pop %v270
    %272 = vadd.xlane.f32.xlu0 %v271
    %v273 = vpop.xlane.xlu0 %272
    %v274 = vlog2.pop %v273
    %v275 = vmul.f32 %v274, 0.6931472
    %v276 = vsub.f32 %v269, %v275
    %vm277 = vcmask 80896
    %278 = vst.msk [vmem:[#allocation8] sm:$0xff] %vm277, %v276
    // Predicated region
    $region34: #{tpu_custom_call.1} parent=1 // pred_check
      _
    $region35: #{tpu_custom_call.1} parent=1 // pred_check_branch
      %280 = sbr.rel (0) target = $region37
    $region36: #{tpu_custom_call.1} parent=1 // pred_region
      %s282 = ssub.s32 128, 128
      %283 = vsyncadd [#allocation4], %s282
      %s285 = sshll.u32 [#allocation8], 4
      %s286 = int_to_ptr.vmem [resolvable:$true] %s285
      %288 = dma.vmem_to_hbm [thread:$0]  %s286, 128, %s5, [#allocation4]
    $region37: #{tpu_custom_call.1} parent=1 // pred_fallthru
      _
    // Predicated region
    $region38: #{tpu_custom_call.1} parent=1 // pred_check
      _
    $region39: #{tpu_custom_call.1} parent=1 // pred_check_branch
      %290 = sbr.rel (0) target = $region41
    $region40: #{tpu_custom_call.1} parent=1 // pred_region
      %291 = dma.done [#allocation4], 128
    $region41: #{tpu_custom_call.1} parent=1 // pred_fallthru
      _
    %292 = vsyncpa [#allocation3], 1
    %293 = vsyncpa [#allocation6], 1
    %294 = vsyncpa [#allocation4], 1

</llo_original>
